<compile_context>
chip_gen: v5e
topology: v5e:2x2
jax: 0.10.0
libtpu: 0.0.40
codegen_flags: <defaults>
</compile_context>

<pallas_src>
import functools

import jax
import jax.numpy as jnp
from jax.experimental import pallas as pl
from jax.experimental.pallas import tpu as pltpu


# ----------------------------------------------------------------------------
# In-kernel helper: 3x3 conv (stride 1, pad 1) + LeakyReLU(0.2) as one im2col
# matmul.  `src` is the input activation as a lane-dense (C, lanes) f32 value
# (lanes = NB*H*W, images packed along lanes).
# ----------------------------------------------------------------------------
def _conv3x3_lrelu(src, mask, wT, b, W):
    # src:  (C, lanes)      f32
    # mask: (9, lanes)      f32 {0,1} per-tap boundary validity
    # wT:   (Cout, 9*C)     bf16, column = tap*C + cin
    # b:    (Cout, 1)       f32
    C, lanes = src.shape
    rows = []
    for tap in range(9):
        dy, dx = tap // 3, tap % 3
        d = (dy - 1) * W + (dx - 1)                 # flat spatial shift
        if d == 0:
            rows.append(src)                        # center tap: always in-bounds
        else:
            # shifted[j] = src[j + d]; boundary mask zeroes every wrapped /
            # out-of-image column (3x3 / pad=1 stencil, also across the packed
            # image boundaries along the lane axis).
            shifted = pltpu.roll(src, (-d) % lanes, axis=1)
            rows.append(shifted * mask[tap:tap + 1, :])
    # Assemble in f32 (8-row slabs are sublane-group aligned), single cast to
    # bf16 for the MXU.
    pat = jnp.concatenate(rows, axis=0).astype(jnp.bfloat16)   # (9*C, lanes)
    y = jnp.dot(wT, pat, preferred_element_type=jnp.float32) + b
    return jnp.where(y >= 0.0, y, 0.2 * y)          # LeakyReLU(0.2), f32


# ----------------------------------------------------------------------------
# Fused kernel: one grid step == `NB` batch elements packed along lanes.
# ----------------------------------------------------------------------------
def _upsample_fused_kernel(x_ref, cc_ref, kT_ref, mask_ref,
                           wa_ref, ba_ref, wb_ref, bb_ref, o_ref,
                           *, W, HW, NB, Cin, Cin_pad):
    # x_ref:   (NB, Cx, Hin*Win)    low-res input, spatially flattened
    # cc_ref:  (NB, Cc, H*W)        skip connection, spatially flattened
    # kT_ref:  (Hin*Win, H*W)       kron(Ry, Rx)^T bilinear matrix, bf16
    # mask_ref:(9, NB*H*W)          per-tap boundary masks (tiled per image)
    # wa_ref:  (CoutPad, 9*Cin_pad) bf16, ba_ref: (CoutPad, 1) f32
    # wb_ref:  (Cout, 9*CoutPad)    bf16, bb_ref: (Cout, 1) f32
    # o_ref:   (NB, Cout, H*W)
    lanes = NB * HW
    mask = mask_ref[...]                             # (9, lanes) f32
    kT = kT_ref[...]                                 # bf16

    # 1) bilinear upsample (align_corners=True) as one MXU matmul per image,
    #    concatenated with the skip channels; images packed along lanes.
    #    Everything stays in registers (no cat scratch).
    cats = []
    for n in range(NB):
        up = jnp.dot(x_ref[n].astype(jnp.bfloat16), kT,
                     preferred_element_type=jnp.float32)         # (Cx, HW) f32
        cats.append(jnp.concatenate(
            [up, cc_ref[n].astype(jnp.float32)], axis=0))        # (Cin, HW)
    cat = jnp.concatenate(cats, axis=1)                          # (Cin, lanes)
    if Cin_pad > Cin:
        cat = jnp.concatenate(
            [cat, jnp.zeros((Cin_pad - Cin, lanes), jnp.float32)], axis=0)

    # 2) convA (3x3, pad=1) + LeakyReLU; output rows padded to a multiple of 8
    #    (padded rows have zero weights/bias -> stay exactly 0) so convB's tap
    #    slabs are sublane-group aligned.
    hA = _conv3x3_lrelu(cat, mask, wa_ref[...], ba_ref[...], W)  # (CoutPad, lanes)

    # 3) convB (3x3, pad=1) + LeakyReLU
    hB = _conv3x3_lrelu(hA, mask, wb_ref[...], bb_ref[...], W)   # (Cout, lanes)

    # 4) lane-dense stores: one full (Cout, HW) slab per image
    for n in range(NB):
        o_ref[n] = hB[:, n * HW:(n + 1) * HW].astype(o_ref.dtype)


# ----------------------------------------------------------------------------
# Wrapper-level (cheap, one-time) constant prep
# ----------------------------------------------------------------------------
def _interp_matrix(out_size, in_size):
    """R (out_size, in_size): R @ v = 1D linear interpolation, align_corners=True."""
    if out_size == 1:
        src = jnp.zeros((out_size,), jnp.float32)
    else:
        src = jnp.arange(out_size, dtype=jnp.float32) * (
            (in_size - 1) / (out_size - 1))
    i0 = jnp.clip(jnp.floor(src).astype(jnp.int32), 0, in_size - 1)
    i1 = jnp.clip(i0 + 1, 0, in_size - 1)
    f = src - i0.astype(jnp.float32)
    oh0 = jax.nn.one_hot(i0, in_size, dtype=jnp.float32)
    oh1 = jax.nn.one_hot(i1, in_size, dtype=jnp.float32)
    return oh0 * (1.0 - f)[:, None] + oh1 * f[:, None]


def _tap_masks(H, W):
    """(9, H*W) {0,1} masks: tap (dy,dx) reads input (h+dy-1, w+dx-1) in-bounds."""
    j = jnp.arange(H * W, dtype=jnp.int32)
    hh = j // W
    ww = j % W
    rows = []
    for dy in range(3):
        for dx in range(3):
            ok_h = (hh + dy - 1 >= 0) & (hh + dy - 1 < H)
            ok_w = (ww + dx - 1 >= 0) & (ww + dx - 1 < W)
            rows.append((ok_h & ok_w).astype(jnp.float32))
    return jnp.stack(rows, axis=0)


def _prep_weight(w, cin_pad, cout_pad):
    """HWIO (3,3,cin,cout) -> (cout_pad, 9*cin_pad) bf16, column = tap*cin_pad + ci."""
    kh, kw, cin, cout = w.shape
    wt = jnp.transpose(w.reshape(kh * kw, cin, cout), (2, 0, 1))    # (cout, 9, cin)
    wt = jnp.pad(wt, ((0, cout_pad - cout), (0, 0), (0, cin_pad - cin)))
    return wt.reshape(cout_pad, kh * kw * cin_pad).astype(jnp.bfloat16)


# ----------------------------------------------------------------------------
# Full module forward (NCHW in / NCHW out, like the PyTorch module).
# ----------------------------------------------------------------------------
def upsample_forward(x, concat_with, params, batch_tile=None):
    N, Cx, Hin, Win = x.shape
    Nc, Cc, H, W = concat_with.shape
    assert N == Nc
    Cin = Cx + Cc
    Cout = params["bA"].shape[0]
    HW = H * W
    HinWin = Hin * Win

    # --- how many images to pack into the lane axis per grid step -----------
    if batch_tile is None:
        cap = min(N, max(1, 2048 // HW))          # lane budget per grid step
        if N >= 2:
            cap = min(cap, max(1, N // 2))        # keep >=2 grid steps (v7x 2 TCs)
        batch_tile = cap
        while N % batch_tile:
            batch_tile -= 1
    assert N % batch_tile == 0
    NB = batch_tile
    lanes = NB * HW

    # --- constants -----------------------------------------------------------
    ry = _interp_matrix(H, Hin)                       # (H, Hin)
    rx = _interp_matrix(W, Win)                       # (W, Win)
    kT = jnp.kron(ry, rx).T.astype(jnp.bfloat16)      # (Hin*Win, H*W)
    mask = jnp.tile(_tap_masks(H, W), (1, NB))        # (9, NB*H*W)

    cin_pad = -(-Cin // 8) * 8                        # convA input channels, 8-aligned
    cout_pad = -(-Cout // 8) * 8                      # convA output channels, 8-aligned
    waT = _prep_weight(params["wA"], cin_pad, cout_pad)       # (cout_pad, 9*cin_pad)
    baC = jnp.pad(params["bA"].astype(jnp.float32),
                  (0, cout_pad - Cout)).reshape(cout_pad, 1)
    wbT = _prep_weight(params["wB"], cout_pad, Cout)          # (Cout, 9*cout_pad)
    bbC = params["bB"].reshape(Cout, 1).astype(jnp.float32)

    x_flat = x.reshape(N, Cx, HinWin)                 # free metadata reshapes
    cc_flat = concat_with.reshape(N, Cc, HW)

    kernel = functools.partial(_upsample_fused_kernel, W=W, HW=HW, NB=NB,
                               Cin=Cin, Cin_pad=cin_pad)
    out_flat = pl.pallas_call(
        kernel,
        out_shape=jax.ShapeDtypeStruct((N, Cout, HW), x.dtype),
        grid_spec=pltpu.PrefetchScalarGridSpec(
            num_scalar_prefetch=0,
            grid=(N // NB,),
            in_specs=[
                pl.BlockSpec((NB, Cx, HinWin), lambda g: (g, 0, 0)),
                pl.BlockSpec((NB, Cc, HW), lambda g: (g, 0, 0)),
                pl.BlockSpec((HinWin, HW), lambda g: (0, 0)),
                pl.BlockSpec((9, lanes), lambda g: (0, 0)),
                pl.BlockSpec((cout_pad, 9 * cin_pad), lambda g: (0, 0)),
                pl.BlockSpec((cout_pad, 1), lambda g: (0, 0)),
                pl.BlockSpec((Cout, 9 * cout_pad), lambda g: (0, 0)),
                pl.BlockSpec((Cout, 1), lambda g: (0, 0)),
            ],
            out_specs=pl.BlockSpec((NB, Cout, HW), lambda g: (g, 0, 0)),
        ),
        compiler_params=pltpu.CompilerParams(
            dimension_semantics=("parallel",)),
    )(x_flat, cc_flat, kT, mask, waT, baC, wbT, bbC)

    return out_flat.reshape(N, Cout, H, W)            # NCHW, free reshape


def init_params(key, input_channels, output_channels):
    kA, kB, kbA, kbB = jax.random.split(key, 4)
    # deterministic synthetic init (shapes match nn.Conv2d(.., 3, 1, 1)); HWIO layout
    wA = 0.1 * jax.random.normal(kA, (3, 3, input_channels, output_channels), jnp.float32)
    bA = 0.1 * jax.random.normal(kbA, (output_channels,), jnp.float32)
    wB = 0.1 * jax.random.normal(kB, (3, 3, output_channels, output_channels), jnp.float32)
    bB = 0.1 * jax.random.normal(kbB, (output_channels,), jnp.float32)
    return {"wA": wA, "bA": bA, "wB": wB, "bB": bB}


# ----------------------------------------------------------------------------
# Pure-JAX f32 reference (same semantics as the PyTorch module) for verification.
# ----------------------------------------------------------------------------
def _reference_forward(x, concat_with, params):
    Hin, Win = x.shape[2], x.shape[3]
    H, W = concat_with.shape[2], concat_with.shape[3]

    def coords(out_size, in_size):
        if out_size == 1:
            src = jnp.zeros((out_size,), jnp.float32)
        else:
            src = jnp.arange(out_size, dtype=jnp.float32) * (
                (in_size - 1) / (out_size - 1))
        i0 = jnp.clip(jnp.floor(src).astype(jnp.int32), 0, in_size - 1)
        i1 = jnp.clip(i0 + 1, 0, in_size - 1)
        return i0, i1, src - i0.astype(jnp.float32)

    y0, y1, fy = coords(H, Hin)
    x0, x1, fx = coords(W, Win)
    top, bot = x[:, :, y0, :], x[:, :, y1, :]
    tl, tr = top[:, :, :, x0], top[:, :, :, x1]
    bl, br = bot[:, :, :, x0], bot[:, :, :, x1]
    fy_ = fy[None, None, :, None]
    fx_ = fx[None, None, None, :]
    up = ((tl * (1 - fx_) + tr * fx_) * (1 - fy_)
          + (bl * (1 - fx_) + br * fx_) * fy_)
    h = jnp.concatenate([up, concat_with], axis=1)

    def conv(a, w, b):
        y = jax.lax.conv_general_dilated(
            a, w, (1, 1), ((1, 1), (1, 1)),
            dimension_numbers=("NCHW", "HWIO", "NCHW"))
        y = y + b[None, :, None, None]
        return jnp.where(y >= 0.0, y, 0.2 * y)

    h = conv(h, params["wA"], params["bA"])
    h = conv(h, params["wB"], params["bB"])
    return h


if __name__ == "__main__":
    key = jax.random.PRNGKey(0)
    kx, kc, kp = jax.random.split(key, 3)

    # x has 4 channels, concat_with has 4 channels -> input_channels = 8
    input_channels, output_channels = 8, 4
    N = 4
    x = jax.random.normal(kx, (N, 4, 8, 8), jnp.float32)              # NCHW, low-res
    concat_with = jax.random.normal(kc, (N, 4, 16, 16), jnp.float32)  # NCHW, target res

    params = init_params(kp, input_channels, output_channels)

    out = upsample_forward(x, concat_with, params)
    out = jax.block_until_ready(out)
    assert out.shape == (N, output_channels, 16, 16), out.shape

    ref = jax.block_until_ready(_reference_forward(x, concat_with, params))
    err = float(jnp.max(jnp.abs(out - ref)))
    # bf16 MXU operands (f32 accumulation) -> expect O(1e-2) max abs deviation
    assert err < 5e-2, f"max abs error vs f32 reference: {err}"
    print("KERNEL_OK")
</pallas_src>

<mosaic_0001>
module attributes {stable_mosaic.version = 11 : i64} {
  func.func @_upsample_fused_kernel(%arg0: i32, %arg1: memref<2x4x64xf32, #tpu.memory_space<vmem>>, %arg2: memref<2x4x256xf32, #tpu.memory_space<vmem>>, %arg3: memref<64x256xbf16, #tpu.memory_space<vmem>>, %arg4: memref<9x512xf32, #tpu.memory_space<vmem>>, %arg5: memref<8x72xbf16, #tpu.memory_space<vmem>>, %arg6: memref<8x1xf32, #tpu.memory_space<vmem>>, %arg7: memref<4x72xbf16, #tpu.memory_space<vmem>>, %arg8: memref<4x1xf32, #tpu.memory_space<vmem>>, %arg9: memref<2x4x256xf32, #tpu.memory_space<vmem>>) attributes {dimension_semantics = [#tpu.dimension_semantics<parallel>], iteration_bounds = array<i64: 2>, scalar_prefetch = 0 : i64, scratch_operands = 0 : i64, tpu.core_type = #tpu.core_type<tc>, window_params = [{transform_indices = @transform_0, window_bounds = array<i64: 2, 4, 64>}, {transform_indices = @transform_1, window_bounds = array<i64: 2, 4, 256>}, {pipeline_mode = #tpu.pipeline_mode<synchronous>, transform_indices = @transform_2, window_bounds = array<i64: 64, 256>}, {pipeline_mode = #tpu.pipeline_mode<synchronous>, transform_indices = @transform_3, window_bounds = array<i64: 9, 512>}, {pipeline_mode = #tpu.pipeline_mode<synchronous>, transform_indices = @transform_4, window_bounds = array<i64: 8, 72>}, {pipeline_mode = #tpu.pipeline_mode<synchronous>, transform_indices = @transform_5, window_bounds = array<i64: 8, 1>}, {pipeline_mode = #tpu.pipeline_mode<synchronous>, transform_indices = @transform_6, window_bounds = array<i64: 4, 72>}, {pipeline_mode = #tpu.pipeline_mode<synchronous>, transform_indices = @transform_7, window_bounds = array<i64: 4, 1>}, {transform_indices = @transform_8, window_bounds = array<i64: 2, 4, 256>}]} {
    %c0 = arith.constant 0 : index
    %c0_0 = arith.constant 0 : index
    %0 = vector.load %arg4[%c0, %c0_0] : memref<9x512xf32, #tpu.memory_space<vmem>>, vector<9x512xf32>
    %c0_1 = arith.constant 0 : index
    %c0_2 = arith.constant 0 : index
    %1 = vector.load %arg3[%c0_1, %c0_2] : memref<64x256xbf16, #tpu.memory_space<vmem>>, vector<64x256xbf16>
    %c0_3 = arith.constant 0 : index
    %c0_4 = arith.constant 0 : index
    %c0_5 = arith.constant 0 : index
    %2 = vector.load %arg1[%c0_3, %c0_4, %c0_5] : memref<2x4x64xf32, #tpu.memory_space<vmem>>, vector<1x4x64xf32>
    %3 = vector.shape_cast %2 : vector<1x4x64xf32> to vector<4x64xf32>
    %4 = arith.truncf %3 : vector<4x64xf32> to vector<4x64xbf16>
    %cst = arith.constant dense<0.000000e+00> : vector<4x256xf32>
    %5 = tpu.matmul %4, %1, %cst {dimension_numbers = #tpu.dot_dimension_numbers<[1], [0], [0], [1], [0, 0, 1, 1], [], []>} : vector<4x64xbf16>, vector<64x256xbf16>, vector<4x256xf32> -> vector<4x256xf32>
    %c0_6 = arith.constant 0 : index
    %c0_7 = arith.constant 0 : index
    %c0_8 = arith.constant 0 : index
    %6 = vector.load %arg2[%c0_6, %c0_7, %c0_8] : memref<2x4x256xf32, #tpu.memory_space<vmem>>, vector<1x4x256xf32>
    %7 = vector.shape_cast %6 : vector<1x4x256xf32> to vector<4x256xf32>
    %8 = tpu.concatenate %5, %7 in 0 : vector<4x256xf32>, vector<4x256xf32> -> vector<8x256xf32>
    %c1 = arith.constant 1 : index
    %c0_9 = arith.constant 0 : index
    %c0_10 = arith.constant 0 : index
    %9 = vector.load %arg1[%c1, %c0_9, %c0_10] : memref<2x4x64xf32, #tpu.memory_space<vmem>>, vector<1x4x64xf32>
    %10 = vector.shape_cast %9 : vector<1x4x64xf32> to vector<4x64xf32>
    %11 = arith.truncf %10 : vector<4x64xf32> to vector<4x64xbf16>
    %cst_11 = arith.constant dense<0.000000e+00> : vector<4x256xf32>
    %12 = tpu.matmul %11, %1, %cst_11 {dimension_numbers = #tpu.dot_dimension_numbers<[1], [0], [0], [1], [0, 0, 1, 1], [], []>} : vector<4x64xbf16>, vector<64x256xbf16>, vector<4x256xf32> -> vector<4x256xf32>
    %c1_12 = arith.constant 1 : index
    %c0_13 = arith.constant 0 : index
    %c0_14 = arith.constant 0 : index
    %13 = vector.load %arg2[%c1_12, %c0_13, %c0_14] : memref<2x4x256xf32, #tpu.memory_space<vmem>>, vector<1x4x256xf32>
    %14 = vector.shape_cast %13 : vector<1x4x256xf32> to vector<4x256xf32>
    %15 = tpu.concatenate %12, %14 in 0 : vector<4x256xf32>, vector<4x256xf32> -> vector<8x256xf32>
    %16 = tpu.concatenate %8, %15 in 1 : vector<8x256xf32>, vector<8x256xf32> -> vector<8x512xf32>
    %c0_15 = arith.constant 0 : index
    %c0_16 = arith.constant 0 : index
    %17 = vector.load %arg5[%c0_15, %c0_16] : memref<8x72xbf16, #tpu.memory_space<vmem>>, vector<8x72xbf16>
    %c0_17 = arith.constant 0 : index
    %c0_18 = arith.constant 0 : index
    %18 = vector.load %arg6[%c0_17, %c0_18] : memref<8x1xf32, #tpu.memory_space<vmem>>, vector<8x1xf32>
    %c17_i32 = arith.constant 17 : i32
    %19 = tpu.dynamic_rotate %16 by %c17_i32 dim 1 : vector<8x512xf32>, i32 -> vector<8x512xf32>
    %20 = vector.extract_strided_slice %0 {offsets = [0, 0], sizes = [1, 512], strides = [1, 1]} : vector<9x512xf32> to vector<1x512xf32>
    %21 = vector.broadcast %20 : vector<1x512xf32> to vector<8x512xf32>
    %22 = arith.mulf %19, %21 : vector<8x512xf32>
    %c16_i32 = arith.constant 16 : i32
    %23 = tpu.dynamic_rotate %16 by %c16_i32 dim 1 : vector<8x512xf32>, i32 -> vector<8x512xf32>
    %24 = vector.extract_strided_slice %0 {offsets = [1, 0], sizes = [1, 512], strides = [1, 1]} : vector<9x512xf32> to vector<1x512xf32>
    %25 = vector.broadcast %24 : vector<1x512xf32> to vector<8x512xf32>
    %26 = arith.mulf %23, %25 : vector<8x512xf32>
    %c15_i32 = arith.constant 15 : i32
    %27 = tpu.dynamic_rotate %16 by %c15_i32 dim 1 : vector<8x512xf32>, i32 -> vector<8x512xf32>
    %28 = vector.extract_strided_slice %0 {offsets = [2, 0], sizes = [1, 512], strides = [1, 1]} : vector<9x512xf32> to vector<1x512xf32>
    %29 = vector.broadcast %28 : vector<1x512xf32> to vector<8x512xf32>
    %30 = arith.mulf %27, %29 : vector<8x512xf32>
    %c1_i32 = arith.constant 1 : i32
    %31 = tpu.dynamic_rotate %16 by %c1_i32 dim 1 : vector<8x512xf32>, i32 -> vector<8x512xf32>
    %32 = vector.extract_strided_slice %0 {offsets = [3, 0], sizes = [1, 512], strides = [1, 1]} : vector<9x512xf32> to vector<1x512xf32>
    %33 = vector.broadcast %32 : vector<1x512xf32> to vector<8x512xf32>
    %34 = arith.mulf %31, %33 : vector<8x512xf32>
    %c511_i32 = arith.constant 511 : i32
    %35 = tpu.dynamic_rotate %16 by %c511_i32 dim 1 : vector<8x512xf32>, i32 -> vector<8x512xf32>
    %36 = vector.extract_strided_slice %0 {offsets = [5, 0], sizes = [1, 512], strides = [1, 1]} : vector<9x512xf32> to vector<1x512xf32>
    %37 = vector.broadcast %36 : vector<1x512xf32> to vector<8x512xf32>
    %38 = arith.mulf %35, %37 : vector<8x512xf32>
    %c497_i32 = arith.constant 497 : i32
    %39 = tpu.dynamic_rotate %16 by %c497_i32 dim 1 : vector<8x512xf32>, i32 -> vector<8x512xf32>
    %40 = vector.extract_strided_slice %0 {offsets = [6, 0], sizes = [1, 512], strides = [1, 1]} : vector<9x512xf32> to vector<1x512xf32>
    %41 = vector.broadcast %40 : vector<1x512xf32> to vector<8x512xf32>
    %42 = arith.mulf %39, %41 : vector<8x512xf32>
    %c496_i32 = arith.constant 496 : i32
    %43 = tpu.dynamic_rotate %16 by %c496_i32 dim 1 : vector<8x512xf32>, i32 -> vector<8x512xf32>
    %44 = vector.extract_strided_slice %0 {offsets = [7, 0], sizes = [1, 512], strides = [1, 1]} : vector<9x512xf32> to vector<1x512xf32>
    %45 = vector.broadcast %44 : vector<1x512xf32> to vector<8x512xf32>
    %46 = arith.mulf %43, %45 : vector<8x512xf32>
    %c495_i32 = arith.constant 495 : i32
    %47 = tpu.dynamic_rotate %16 by %c495_i32 dim 1 : vector<8x512xf32>, i32 -> vector<8x512xf32>
    %48 = vector.extract_strided_slice %0 {offsets = [8, 0], sizes = [1, 512], strides = [1, 1]} : vector<9x512xf32> to vector<1x512xf32>
    %49 = vector.broadcast %48 : vector<1x512xf32> to vector<8x512xf32>
    %50 = arith.mulf %47, %49 : vector<8x512xf32>
    %51 = tpu.concatenate %22, %26, %30, %34, %16, %38, %42, %46, %50 in 0 : vector<8x512xf32>, vector<8x512xf32>, vector<8x512xf32>, vector<8x512xf32>, vector<8x512xf32>, vector<8x512xf32>, vector<8x512xf32>, vector<8x512xf32>, vector<8x512xf32> -> vector<72x512xf32>
    %52 = arith.truncf %51 : vector<72x512xf32> to vector<72x512xbf16>
    %cst_19 = arith.constant dense<0.000000e+00> : vector<8x512xf32>
    %53 = tpu.matmul %17, %52, %cst_19 {dimension_numbers = #tpu.dot_dimension_numbers<[1], [0], [0], [1], [0, 0, 1, 1], [], []>} : vector<8x72xbf16>, vector<72x512xbf16>, vector<8x512xf32> -> vector<8x512xf32>
    %54 = vector.broadcast %18 : vector<8x1xf32> to vector<8x512xf32>
    %55 = arith.addf %53, %54 : vector<8x512xf32>
    %cst_20 = arith.constant 0.000000e+00 : f32
    %56 = vector.broadcast %cst_20 : f32 to vector<8x512xf32>
    %57 = arith.cmpf oge, %55, %56 : vector<8x512xf32>
    %cst_21 = arith.constant 2.000000e-01 : f32
    %58 = vector.broadcast %cst_21 : f32 to vector<8x512xf32>
    %59 = arith.mulf %58, %55 : vector<8x512xf32>
    %60 = arith.select %57, %55, %59 : vector<8x512xi1>, vector<8x512xf32>
    %c0_22 = arith.constant 0 : index
    %c0_23 = arith.constant 0 : index
    %61 = vector.load %arg7[%c0_22, %c0_23] : memref<4x72xbf16, #tpu.memory_space<vmem>>, vector<4x72xbf16>
    %c0_24 = arith.constant 0 : index
    %c0_25 = arith.constant 0 : index
    %62 = vector.load %arg8[%c0_24, %c0_25] : memref<4x1xf32, #tpu.memory_space<vmem>>, vector<4x1xf32>
    %c17_i32_26 = arith.constant 17 : i32
    %63 = tpu.dynamic_rotate %60 by %c17_i32_26 dim 1 : vector<8x512xf32>, i32 -> vector<8x512xf32>
    %64 = vector.extract_strided_slice %0 {offsets = [0, 0], sizes = [1, 512], strides = [1, 1]} : vector<9x512xf32> to vector<1x512xf32>
    %65 = vector.broadcast %64 : vector<1x512xf32> to vector<8x512xf32>
    %66 = arith.mulf %63, %65 : vector<8x512xf32>
    %c16_i32_27 = arith.constant 16 : i32
    %67 = tpu.dynamic_rotate %60 by %c16_i32_27 dim 1 : vector<8x512xf32>, i32 -> vector<8x512xf32>
    %68 = vector.extract_strided_slice %0 {offsets = [1, 0], sizes = [1, 512], strides = [1, 1]} : vector<9x512xf32> to vector<1x512xf32>
    %69 = vector.broadcast %68 : vector<1x512xf32> to vector<8x512xf32>
    %70 = arith.mulf %67, %69 : vector<8x512xf32>
    %c15_i32_28 = arith.constant 15 : i32
    %71 = tpu.dynamic_rotate %60 by %c15_i32_28 dim 1 : vector<8x512xf32>, i32 -> vector<8x512xf32>
    %72 = vector.extract_strided_slice %0 {offsets = [2, 0], sizes = [1, 512], strides = [1, 1]} : vector<9x512xf32> to vector<1x512xf32>
    %73 = vector.broadcast %72 : vector<1x512xf32> to vector<8x512xf32>
    %74 = arith.mulf %71, %73 : vector<8x512xf32>
    %c1_i32_29 = arith.constant 1 : i32
    %75 = tpu.dynamic_rotate %60 by %c1_i32_29 dim 1 : vector<8x512xf32>, i32 -> vector<8x512xf32>
    %76 = vector.extract_strided_slice %0 {offsets = [3, 0], sizes = [1, 512], strides = [1, 1]} : vector<9x512xf32> to vector<1x512xf32>
    %77 = vector.broadcast %76 : vector<1x512xf32> to vector<8x512xf32>
    %78 = arith.mulf %75, %77 : vector<8x512xf32>
    %c511_i32_30 = arith.constant 511 : i32
    %79 = tpu.dynamic_rotate %60 by %c511_i32_30 dim 1 : vector<8x512xf32>, i32 -> vector<8x512xf32>
    %80 = vector.extract_strided_slice %0 {offsets = [5, 0], sizes = [1, 512], strides = [1, 1]} : vector<9x512xf32> to vector<1x512xf32>
    %81 = vector.broadcast %80 : vector<1x512xf32> to vector<8x512xf32>
    %82 = arith.mulf %79, %81 : vector<8x512xf32>
    %c497_i32_31 = arith.constant 497 : i32
    %83 = tpu.dynamic_rotate %60 by %c497_i32_31 dim 1 : vector<8x512xf32>, i32 -> vector<8x512xf32>
    %84 = vector.extract_strided_slice %0 {offsets = [6, 0], sizes = [1, 512], strides = [1, 1]} : vector<9x512xf32> to vector<1x512xf32>
    %85 = vector.broadcast %84 : vector<1x512xf32> to vector<8x512xf32>
    %86 = arith.mulf %83, %85 : vector<8x512xf32>
    %c496_i32_32 = arith.constant 496 : i32
    %87 = tpu.dynamic_rotate %60 by %c496_i32_32 dim 1 : vector<8x512xf32>, i32 -> vector<8x512xf32>
    %88 = vector.extract_strided_slice %0 {offsets = [7, 0], sizes = [1, 512], strides = [1, 1]} : vector<9x512xf32> to vector<1x512xf32>
    %89 = vector.broadcast %88 : vector<1x512xf32> to vector<8x512xf32>
    %90 = arith.mulf %87, %89 : vector<8x512xf32>
    %c495_i32_33 = arith.constant 495 : i32
    %91 = tpu.dynamic_rotate %60 by %c495_i32_33 dim 1 : vector<8x512xf32>, i32 -> vector<8x512xf32>
    %92 = vector.extract_strided_slice %0 {offsets = [8, 0], sizes = [1, 512], strides = [1, 1]} : vector<9x512xf32> to vector<1x512xf32>
    %93 = vector.broadcast %92 : vector<1x512xf32> to vector<8x512xf32>
    %94 = arith.mulf %91, %93 : vector<8x512xf32>
    %95 = tpu.concatenate %66, %70, %74, %78, %60, %82, %86, %90, %94 in 0 : vector<8x512xf32>, vector<8x512xf32>, vector<8x512xf32>, vector<8x512xf32>, vector<8x512xf32>, vector<8x512xf32>, vector<8x512xf32>, vector<8x512xf32>, vector<8x512xf32> -> vector<72x512xf32>
    %96 = arith.truncf %95 : vector<72x512xf32> to vector<72x512xbf16>
    %cst_34 = arith.constant dense<0.000000e+00> : vector<4x512xf32>
    %97 = tpu.matmul %61, %96, %cst_34 {dimension_numbers = #tpu.dot_dimension_numbers<[1], [0], [0], [1], [0, 0, 1, 1], [], []>} : vector<4x72xbf16>, vector<72x512xbf16>, vector<4x512xf32> -> vector<4x512xf32>
    %98 = vector.broadcast %62 : vector<4x1xf32> to vector<4x512xf32>
    %99 = arith.addf %97, %98 : vector<4x512xf32>
    %cst_35 = arith.constant 0.000000e+00 : f32
    %100 = vector.broadcast %cst_35 : f32 to vector<4x512xf32>
    %101 = arith.cmpf oge, %99, %100 : vector<4x512xf32>
    %cst_36 = arith.constant 2.000000e-01 : f32
    %102 = vector.broadcast %cst_36 : f32 to vector<4x512xf32>
    %103 = arith.mulf %102, %99 : vector<4x512xf32>
    %104 = arith.select %101, %99, %103 : vector<4x512xi1>, vector<4x512xf32>
    %105 = vector.extract_strided_slice %104 {offsets = [0, 0], sizes = [4, 256], strides = [1, 1]} : vector<4x512xf32> to vector<4x256xf32>
    %c0_37 = arith.constant 0 : index
    %c0_38 = arith.constant 0 : index
    %c0_39 = arith.constant 0 : index
    %106 = vector.load %arg9[%c0_37, %c0_38, %c0_39] : memref<2x4x256xf32, #tpu.memory_space<vmem>>, vector<1x4x256xf32>
    %107 = vector.shape_cast %106 : vector<1x4x256xf32> to vector<4x256xf32>
    %108 = vector.shape_cast %105 : vector<4x256xf32> to vector<1x4x256xf32>
    tpu.vector_store %arg9[%c0_37, %c0_38, %c0_39], %108 {strides = array<i32>} : memref<2x4x256xf32, #tpu.memory_space<vmem>>, vector<1x4x256xf32>,
    %109 = vector.extract_strided_slice %104 {offsets = [0, 256], sizes = [4, 256], strides = [1, 1]} : vector<4x512xf32> to vector<4x256xf32>
    %c1_40 = arith.constant 1 : index
    %c0_41 = arith.constant 0 : index
    %c0_42 = arith.constant 0 : index
    %110 = vector.load %arg9[%c1_40, %c0_41, %c0_42] : memref<2x4x256xf32, #tpu.memory_space<vmem>>, vector<1x4x256xf32>
    %111 = vector.shape_cast %110 : vector<1x4x256xf32> to vector<4x256xf32>
    %112 = vector.shape_cast %109 : vector<4x256xf32> to vector<1x4x256xf32>
    tpu.vector_store %arg9[%c1_40, %c0_41, %c0_42], %112 {strides = array<i32>} : memref<2x4x256xf32, #tpu.memory_space<vmem>>, vector<1x4x256xf32>,
    return
  }
  func.func @transform_0(%arg0: i32) -> (i32, i32, i32) {
    %c0_i32 = arith.constant 0 : i32
    %c0_i32_0 = arith.constant 0 : i32
    %c0_i32_1 = arith.constant 0 : i32
    return %arg0, %c0_i32, %c0_i32_0 : i32, i32, i32
  }
  func.func @transform_1(%arg0: i32) -> (i32, i32, i32) {
    %c0_i32 = arith.constant 0 : i32
    %c0_i32_0 = arith.constant 0 : i32
    %c0_i32_1 = arith.constant 0 : i32
    return %arg0, %c0_i32, %c0_i32_0 : i32, i32, i32
  }
  func.func @transform_2(%arg0: i32) -> (i32, i32) {
    %c0_i32 = arith.constant 0 : i32
    %c0_i32_0 = arith.constant 0 : i32
    %c0_i32_1 = arith.constant 0 : i32
    return %c0_i32, %c0_i32_0 : i32, i32
  }
  func.func @transform_3(%arg0: i32) -> (i32, i32) {
    %c0_i32 = arith.constant 0 : i32
    %c0_i32_0 = arith.constant 0 : i32
    %c0_i32_1 = arith.constant 0 : i32
    return %c0_i32, %c0_i32_0 : i32, i32
  }
  func.func @transform_4(%arg0: i32) -> (i32, i32) {
    %c0_i32 = arith.constant 0 : i32
    %c0_i32_0 = arith.constant 0 : i32
    %c0_i32_1 = arith.constant 0 : i32
    return %c0_i32, %c0_i32_0 : i32, i32
  }
  func.func @transform_5(%arg0: i32) -> (i32, i32) {
    %c0_i32 = arith.constant 0 : i32
    %c0_i32_0 = arith.constant 0 : i32
    %c0_i32_1 = arith.constant 0 : i32
    return %c0_i32, %c0_i32_0 : i32, i32
  }
  func.func @transform_6(%arg0: i32) -> (i32, i32) {
    %c0_i32 = arith.constant 0 : i32
    %c0_i32_0 = arith.constant 0 : i32
    %c0_i32_1 = arith.constant 0 : i32
    return %c0_i32, %c0_i32_0 : i32, i32
  }
  func.func @transform_7(%arg0: i32) -> (i32, i32) {
    %c0_i32 = arith.constant 0 : i32
    %c0_i32_0 = arith.constant 0 : i32
    %c0_i32_1 = arith.constant 0 : i32
    return %c0_i32, %c0_i32_0 : i32, i32
  }
  func.func @transform_8(%arg0: i32) -> (i32, i32, i32) {
    %c0_i32 = arith.constant 0 : i32
    %c0_i32_0 = arith.constant 0 : i32
    %c0_i32_1 = arith.constant 0 : i32
    return %arg0, %c0_i32, %c0_i32_0 : i32, i32, i32
  }
}

</mosaic_0001>

<llo_original>
// kernel: tpu_custom_call.1
$region0: #{tpu_custom_call.1}
  #allocation0 [shape = 'u32[]', space=smem, size = 0x4, offset = 0x4, fixed_abs, tag = 'smem constant byte address 0x4 - core index']
  #allocation1 [shape = 'u32[72,128]{1,0:T(1,128)}', space=vmem, size = 0x9000, scoped, tag = 'internal scratch']
  %s0 = inlined_call_operand.hbm [shape: f32[4,4,64], index: 0, kind: input, shape index: {}]
  %s1 = inlined_call_operand.hbm [shape: f32[4,4,256], index: 1, kind: input, shape index: {}]
  %s2 = inlined_call_operand.hbm [shape: bf16[64,256], index: 2, kind: input, shape index: {}]
  %s3 = inlined_call_operand.hbm [shape: f32[9,512], index: 3, kind: input, shape index: {}]
  %s4 = inlined_call_operand.vmem [shape: bf16[8,72], index: 4, kind: input, shape index: {}]
  %s5 = inlined_call_operand.vmem [shape: f32[8,1], index: 5, kind: input, shape index: {}]
  %s6 = inlined_call_operand.vmem [shape: bf16[4,72], index: 6, kind: input, shape index: {}]
  %s7 = inlined_call_operand.vmem [shape: f32[4,1], index: 7, kind: input, shape index: {}]
  %s8 = inlined_call_operand.hbm [shape: f32[4,4,256], index: 8, kind: output, shape index: {}]
  %s9 = sld [smem:[#allocation0]]
  $region81: #{tpu_custom_call.1} parent=0
    _
  %s11 = ssub.s32 1, %s9
  %s12 = scalar_select 0, %s11, %s9
  $region1: #{tpu_custom_call.1} parent=0
    #allocation2 [shape = 'u8[8192]{0}', space=vmem, size = 0x2000, scoped, tag = 'input window, operand 0']
    #allocation3 [shape = 's32[2]{0}', space=sflag, size = 0x8, scoped, tag = 'scoped memory for tpu_custom_call.1']
    #allocation4 [shape = 's32[2]{0}', space=sflag, size = 0x8, scoped, tag = 'scoped memory for tpu_custom_call.1']
    #allocation5 [shape = 'u8[16384]{0}', space=vmem, size = 0x4000, scoped, tag = 'input window, operand 1']
    #allocation6 [shape = 's32[2]{0}', space=sflag, size = 0x8, scoped, tag = 'scoped memory for tpu_custom_call.1']
    #allocation7 [shape = 'u8[32768]{0}', space=vmem, size = 0x8000, scoped, tag = 'input window, operand 2, single buffered']
    #allocation8 [shape = 'u8[32768]{0}', space=vmem, size = 0x8000, scoped, tag = 'input window, operand 3, single buffered']
    #allocation9 [shape = 's32[1]{0}', space=sflag, size = 0x4, scoped, tag = 'scoped memory for tpu_custom_call.1']
    #allocation10 [shape = 'u8[16384]{0}', space=vmem, size = 0x4000, scoped, tag = 'output window, operand 0']
    %13 = vsyncpa [#allocation3], 0
    %s14 = scalar_lea.sflag [#allocation3], 1
    %15 = vsyncpa %s14, 0
    %16 = vsyncpa [#allocation6], 0
    %s17 = scalar_lea.sflag [#allocation6], 1
    %18 = vsyncpa %s17, 0
    %19 = vsyncpa [#allocation9], 0
    %20 = vsyncpa [#allocation4], 0
    %s21 = scalar_lea.sflag [#allocation4], 1
    %22 = vsyncpa %s21, 0
    loop: start=0, step=1, limit=4
    $region2: #{tpu_custom_call.1} parent=1 // loop_pre_header
      _
    $region3: #{tpu_custom_call.1} parent=1 // loop_header
      %s24 = sphi 0, %s28
      %p25 = scmp.ge.s32.totalorder %s24, 4
      %s34 = sphi 0, %s36
      %s37 = sphi 0, %s34
      %s38 = sphi 0, %s37
      %s54 = sphi 0, %s38
      %s60 = sphi 0, %s62
      %s63 = sphi 0, %s60
      %s64 = sphi 0, %s63
      %s80 = sphi 0, %s64
      %s84 = sphi 0, %s84
      %s86 = sphi 0, %s84
      %s87 = sphi 0, %s86
      %s101 = sphi 0, %s87
      %s105 = sphi 0, %s105
      %s107 = sphi 0, %s105
      %s108 = sphi 0, %s107
      %s122 = sphi 0, %s108
      %s126 = sphi 0, %s126
      %s128 = sphi 0, %s126
      %s129 = sphi 0, %s128
      %s143 = sphi 0, %s129
      %s147 = sphi 0, %s147
      %s149 = sphi 0, %s147
      %s150 = sphi 0, %s149
      %s164 = sphi 0, %s150
      %s168 = sphi 0, %s168
      %s170 = sphi 0, %s168
      %s171 = sphi 0, %s170
      %s185 = sphi 0, %s171
      %s189 = sphi 0, %s189
      %s191 = sphi 0, %s189
      %s192 = sphi 0, %s191
      %s206 = sphi 0, %s192
      %s212 = sphi 0, %s214
      %s215 = sphi 0, %s212
      %s216 = sphi 0, %s215
      %s232 = sphi 0, %s216
    $region4: #{tpu_custom_call.1} parent=1 // loop_header_branch
      %27 = sbr.rel (%p25) target = $region8
    $region5: #{tpu_custom_call.1} parent=1 // loop_body
      %s29 = ssub.s32 %s24, 1
      %s30 = ssub.s32 %s24, 2
      %s31 = sadd.s32 %s24, 1
      %s32 = ssub.s32 %s24, %s31
      %p33 = scmp.eq.s32.totalorder %s32, 0
      %s35 = sadd.s32 %s34, 1
      %s36 = scalar_select %p33, %s34, %s35
      %p39 = pneg %p33
      %p40 = scmp.eq.s32.totalorder %s24, 1
      %p41 = por %p39, %p40
      %p42 = scmp.ne.s32.totalorder %s34, %s37
      %p43 = scmp.eq.s32.totalorder %s24, 0
      %p44 = por %p42, %p43
      %p45 = scmp.ne.s32.totalorder %s34, %s37
      %p46 = scmp.eq.s32.totalorder %s29, 1
      %p47 = por %p45, %p46
      %p48 = scmp.ne.s32.totalorder %s37, %s38
      %p49 = scmp.eq.s32.totalorder %s29, 0
      %p50 = por %p48, %p49
      %p51 = scmp.ne.s32.totalorder %s37, %s38
      %p52 = scmp.eq.s32.totalorder %s30, 1
      %p53 = por %p51, %p52
      %p55 = scmp.ne.s32.totalorder %s38, %s54
      %p56 = scmp.eq.s32.totalorder %s30, 0
      %p57 = por %p55, %p56
      %s58 = ssub.s32 %s24, %s31
      %p59 = scmp.eq.s32.totalorder %s58, 0
      %s61 = sadd.s32 %s60, 1
      %s62 = scalar_select %p59, %s60, %s61
      %p65 = pneg %p59
      %p66 = scmp.eq.s32.totalorder %s24, 1
      %p67 = por %p65, %p66
      %p68 = scmp.ne.s32.totalorder %s60, %s63
      %p69 = scmp.eq.s32.totalorder %s24, 0
      %p70 = por %p68, %p69
      %p71 = scmp.ne.s32.totalorder %s60, %s63
      %p72 = scmp.eq.s32.totalorder %s29, 1
      %p73 = por %p71, %p72
      %p74 = scmp.ne.s32.totalorder %s63, %s64
      %p75 = scmp.eq.s32.totalorder %s29, 0
      %p76 = por %p74, %p75
      %p77 = scmp.ne.s32.totalorder %s63, %s64
      %p78 = scmp.eq.s32.totalorder %s30, 1
      %p79 = por %p77, %p78
      %p81 = scmp.ne.s32.totalorder %s64, %s80
      %p82 = scmp.eq.s32.totalorder %s30, 0
      %p83 = por %p81, %p82
      %s85 = sadd.s32 %s84, 1
      %p88 = scmp.eq.s32.totalorder %s24, 1
      %p89 = scmp.ne.s32.totalorder %s84, %s86
      %p90 = scmp.eq.s32.totalorder %s24, 0
      %p91 = por %p89, %p90
      %p92 = scmp.ne.s32.totalorder %s84, %s86
      %p93 = scmp.eq.s32.totalorder %s29, 1
      %p94 = por %p92, %p93
      %p95 = scmp.ne.s32.totalorder %s86, %s87
      %p96 = scmp.eq.s32.totalorder %s29, 0
      %p97 = por %p95, %p96
      %p98 = scmp.ne.s32.totalorder %s86, %s87
      %p99 = scmp.eq.s32.totalorder %s30, 1
      %p100 = por %p98, %p99
      %p102 = scmp.ne.s32.totalorder %s87, %s101
      %p103 = scmp.eq.s32.totalorder %s30, 0
      %p104 = por %p102, %p103
      %s106 = sadd.s32 %s105, 1
      %p109 = scmp.eq.s32.totalorder %s24, 1
      %p110 = scmp.ne.s32.totalorder %s105, %s107
      %p111 = scmp.eq.s32.totalorder %s24, 0
      %p112 = por %p110, %p111
      %p113 = scmp.ne.s32.totalorder %s105, %s107
      %p114 = scmp.eq.s32.totalorder %s29, 1
      %p115 = por %p113, %p114
      %p116 = scmp.ne.s32.totalorder %s107, %s108
      %p117 = scmp.eq.s32.totalorder %s29, 0
      %p118 = por %p116, %p117
      %p119 = scmp.ne.s32.totalorder %s107, %s108
      %p120 = scmp.eq.s32.totalorder %s30, 1
      %p121 = por %p119, %p120
      %p123 = scmp.ne.s32.totalorder %s108, %s122
      %p124 = scmp.eq.s32.totalorder %s30, 0
      %p125 = por %p123, %p124
      %s127 = sadd.s32 %s126, 1
      %p130 = scmp.eq.s32.totalorder %s24, 1
      %p131 = scmp.ne.s32.totalorder %s126, %s128
      %p132 = scmp.eq.s32.totalorder %s24, 0
      %p133 = por %p131, %p132
      %p134 = scmp.ne.s32.totalorder %s126, %s128
      %p135 = scmp.eq.s32.totalorder %s29, 1
      %p136 = por %p134, %p135
      %p137 = scmp.ne.s32.totalorder %s128, %s129
      %p138 = scmp.eq.s32.totalorder %s29, 0
      %p139 = por %p137, %p138
      %p140 = scmp.ne.s32.totalorder %s128, %s129
      %p141 = scmp.eq.s32.totalorder %s30, 1
      %p142 = por %p140, %p141
      %p144 = scmp.ne.s32.totalorder %s129, %s143
      %p145 = scmp.eq.s32.totalorder %s30, 0
      %p146 = por %p144, %p145
      %s148 = sadd.s32 %s147, 1
      %p151 = scmp.eq.s32.totalorder %s24, 1
      %p152 = scmp.ne.s32.totalorder %s147, %s149
      %p153 = scmp.eq.s32.totalorder %s24, 0
      %p154 = por %p152, %p153
      %p155 = scmp.ne.s32.totalorder %s147, %s149
      %p156 = scmp.eq.s32.totalorder %s29, 1
      %p157 = por %p155, %p156
      %p158 = scmp.ne.s32.totalorder %s149, %s150
      %p159 = scmp.eq.s32.totalorder %s29, 0
      %p160 = por %p158, %p159
      %p161 = scmp.ne.s32.totalorder %s149, %s150
      %p162 = scmp.eq.s32.totalorder %s30, 1
      %p163 = por %p161, %p162
      %p165 = scmp.ne.s32.totalorder %s150, %s164
      %p166 = scmp.eq.s32.totalorder %s30, 0
      %p167 = por %p165, %p166
      %s169 = sadd.s32 %s168, 1
      %p172 = scmp.eq.s32.totalorder %s24, 1
      %p173 = scmp.ne.s32.totalorder %s168, %s170
      %p174 = scmp.eq.s32.totalorder %s24, 0
      %p175 = por %p173, %p174
      %p176 = scmp.ne.s32.totalorder %s168, %s170
      %p177 = scmp.eq.s32.totalorder %s29, 1
      %p178 = por %p176, %p177
      %p179 = scmp.ne.s32.totalorder %s170, %s171
      %p180 = scmp.eq.s32.totalorder %s29, 0
      %p181 = por %p179, %p180
      %p182 = scmp.ne.s32.totalorder %s170, %s171
      %p183 = scmp.eq.s32.totalorder %s30, 1
      %p184 = por %p182, %p183
      %p186 = scmp.ne.s32.totalorder %s171, %s185
      %p187 = scmp.eq.s32.totalorder %s30, 0
      %p188 = por %p186, %p187
      %s190 = sadd.s32 %s189, 1
      %p193 = scmp.eq.s32.totalorder %s24, 1
      %p194 = scmp.ne.s32.totalorder %s189, %s191
      %p195 = scmp.eq.s32.totalorder %s24, 0
      %p196 = por %p194, %p195
      %p197 = scmp.ne.s32.totalorder %s189, %s191
      %p198 = scmp.eq.s32.totalorder %s29, 1
      %p199 = por %p197, %p198
      %p200 = scmp.ne.s32.totalorder %s191, %s192
      %p201 = scmp.eq.s32.totalorder %s29, 0
      %p202 = por %p200, %p201
      %p203 = scmp.ne.s32.totalorder %s191, %s192
      %p204 = scmp.eq.s32.totalorder %s30, 1
      %p205 = por %p203, %p204
      %p207 = scmp.ne.s32.totalorder %s192, %s206
      %p208 = scmp.eq.s32.totalorder %s30, 0
      %p209 = por %p207, %p208
      %s210 = ssub.s32 %s24, %s31
      %p211 = scmp.eq.s32.totalorder %s210, 0
      %s213 = sadd.s32 %s212, 1
      %s214 = scalar_select %p211, %s212, %s213
      %p217 = pneg %p211
      %p218 = scmp.eq.s32.totalorder %s24, 1
      %p219 = por %p217, %p218
      %p220 = scmp.ne.s32.totalorder %s212, %s215
      %p221 = scmp.eq.s32.totalorder %s24, 0
      %p222 = por %p220, %p221
      %p223 = scmp.ne.s32.totalorder %s212, %s215
      %p224 = scmp.eq.s32.totalorder %s29, 1
      %p225 = por %p223, %p224
      %p226 = scmp.ne.s32.totalorder %s215, %s216
      %p227 = scmp.eq.s32.totalorder %s29, 0
      %p228 = por %p226, %p227
      %p229 = scmp.ne.s32.totalorder %s215, %s216
      %p230 = scmp.eq.s32.totalorder %s30, 1
      %p231 = por %p229, %p230
      %p233 = scmp.ne.s32.totalorder %s216, %s232
      %p234 = scmp.eq.s32.totalorder %s30, 0
      %p235 = por %p233, %p234
      %p236 = scmp.le.s32.totalorder 1, %s24
      %p237 = scmp.lt.s32.totalorder %s24, 3
      %p238 = pnand %p236, %p237
      %p239 = pneg %p238
      // Predicated region
      $region9: #{tpu_custom_call.1} parent=5 // pred_check
        _
      $region10: #{tpu_custom_call.1} parent=5 // pred_check_branch
        %241 = sbr.rel (%p238) target = $region12
      $region11: #{tpu_custom_call.1} parent=5 // pred_region
        %s242 = ssub.s32 %s24, 1
        // Predicated region
        $region13: #{tpu_custom_call.1} parent=11 // pred_check
          %p243 = pneg %p97
        $region14: #{tpu_custom_call.1} parent=11 // pred_check_branch
          %245 = sbr.rel (%p243) target = $region16
        $region15: #{tpu_custom_call.1} parent=11 // pred_region
          %247 = vsyncadd [#allocation6], 0
          %s248 = sshll.u32 %s2, 4
          %s249 = int_to_ptr.hbm [resolvable:$true] %s248
          %s250 = sshll.u32 [#allocation7], 4
          %s251 = int_to_ptr.vmem [resolvable:$true] %s250
          %256 = dma.hbm_to_vmem [thread:$0]  %s249, 1024, %s251, [#allocation6], 128, 128, 8
        $region16: #{tpu_custom_call.1} parent=11 // pred_fallthru
          _
        // Predicated region
        $region17: #{tpu_custom_call.1} parent=11 // pred_check
          %p257 = pneg %p118
        $region18: #{tpu_custom_call.1} parent=11 // pred_check_branch
          %259 = sbr.rel (%p257) target = $region20
        $region19: #{tpu_custom_call.1} parent=11 // pred_region
          %261 = vsyncadd [#allocation9], 0
          %s262 = sshll.u32 %s3, 4
          %s263 = int_to_ptr.hbm [resolvable:$true] %s262
          %s264 = sshll.u32 [#allocation8], 4
          %s265 = int_to_ptr.vmem [resolvable:$true] %s264
          %270 = dma.hbm_to_vmem [thread:$0]  %s263, 1024, %s265, [#allocation9], 512, 512, 32
        $region20: #{tpu_custom_call.1} parent=11 // pred_fallthru
          _
        // Predicated region
        $region21: #{tpu_custom_call.1} parent=11 // pred_check
          %p271 = pneg %p139
        $region22: #{tpu_custom_call.1} parent=11 // pred_check_branch
          %273 = sbr.rel (%p271) target = $region24
        $region23: #{tpu_custom_call.1} parent=11 // pred_region
          _
        $region24: #{tpu_custom_call.1} parent=11 // pred_fallthru
          _
        // Predicated region
        $region25: #{tpu_custom_call.1} parent=11 // pred_check
          %p274 = pneg %p160
        $region26: #{tpu_custom_call.1} parent=11 // pred_check_branch
          %276 = sbr.rel (%p274) target = $region28
        $region27: #{tpu_custom_call.1} parent=11 // pred_region
          _
        $region28: #{tpu_custom_call.1} parent=11 // pred_fallthru
          _
        // Predicated region
        $region29: #{tpu_custom_call.1} parent=11 // pred_check
          %p277 = pneg %p181
        $region30: #{tpu_custom_call.1} parent=11 // pred_check_branch
          %279 = sbr.rel (%p277) target = $region32
        $region31: #{tpu_custom_call.1} parent=11 // pred_region
          _
        $region32: #{tpu_custom_call.1} parent=11 // pred_fallthru
          _
        // Predicated region
        $region33: #{tpu_custom_call.1} parent=11 // pred_check
          %p280 = pneg %p202
        $region34: #{tpu_custom_call.1} parent=11 // pred_check_branch
          %282 = sbr.rel (%p280) target = $region36
        $region35: #{tpu_custom_call.1} parent=11 // pred_region
          _
        $region36: #{tpu_custom_call.1} parent=11 // pred_fallthru
          _
      $region12: #{tpu_custom_call.1} parent=5 // pred_fallthru
        _
      %p283 = scmp.lt.s32.totalorder %s24, 2
      // Predicated region
      $region37: #{tpu_custom_call.1} parent=5 // pred_check
        %p284 = pneg %p283
      $region38: #{tpu_custom_call.1} parent=5 // pred_check_branch
        %286 = sbr.rel (%p284) target = $region40
      $region39: #{tpu_custom_call.1} parent=5 // pred_region
        // Predicated region
        $region41: #{tpu_custom_call.1} parent=39 // pred_check
          %p287 = pneg %p44
        $region42: #{tpu_custom_call.1} parent=39 // pred_check_branch
          %289 = sbr.rel (%p287) target = $region44
        $region43: #{tpu_custom_call.1} parent=39 // pred_region
          %s290 = sand.u32 %s34, 1
          %s291 = scalar_lea.sflag [#allocation3], %s290
          %s292 = sand.u32 %s34, 1
          %s293 = smul.addr %s292, 8
          %s294 = scalar_lea.vmem [#allocation2], %s293
          %s295 = smul.u32 2, %s24
          %297 = vsyncadd %s291, 0
          %s298 = smul.addr %s295, 4
          %s299 = scalar_lea.hbm %s0, %s298
          %s300 = sshll.u32 %s299, 4
          %s301 = int_to_ptr.hbm [resolvable:$true] %s300
          %s302 = sshll.u32 %s294, 4
          %s303 = int_to_ptr.vmem [resolvable:$true] %s302
          %308 = dma.hbm_to_vmem [thread:$0]  %s301, 128, %s303, %s291, 64, 64, 4
        $region44: #{tpu_custom_call.1} parent=39 // pred_fallthru
          _
        // Predicated region
        $region45: #{tpu_custom_call.1} parent=39 // pred_check
          %p309 = pneg %p70
        $region46: #{tpu_custom_call.1} parent=39 // pred_check_branch
          %311 = sbr.rel (%p309) target = $region48
        $region47: #{tpu_custom_call.1} parent=39 // pred_region
          %s312 = sand.u32 %s24, 1
          %s313 = scalar_lea.sflag [#allocation6], %s312
          %s314 = sand.u32 %s60, 1
          %s315 = smul.addr %s314, 16
          %s316 = scalar_lea.vmem [#allocation5], %s315
          %s317 = smul.u32 2, %s24
          %319 = vsyncadd %s313, 0
          %s320 = smul.addr %s317, 2
          %s321 = smul.addr %s320, 4
          %s322 = scalar_lea.hbm %s1, %s321
          %s323 = sshll.u32 %s322, 4
          %s324 = int_to_ptr.hbm [resolvable:$true] %s323
          %s325 = sshll.u32 %s316, 4
          %s326 = int_to_ptr.vmem [resolvable:$true] %s325
          %331 = dma.hbm_to_vmem [thread:$0]  %s324, 256, %s326, %s313, 128, 128, 8
        $region48: #{tpu_custom_call.1} parent=39 // pred_fallthru
          _
      $region40: #{tpu_custom_call.1} parent=5 // pred_fallthru
        _
      %p332 = scmp.le.s32.totalorder 1, %s24
      %p333 = scmp.lt.s32.totalorder %s24, 3
      %p334 = pnand %p332, %p333
      %p335 = pneg %p334
      // Predicated region
      $region49: #{tpu_custom_call.1} parent=5 // pred_check
        _
      $region50: #{tpu_custom_call.1} parent=5 // pred_check_branch
        %337 = sbr.rel (%p334) target = $region52
      $region51: #{tpu_custom_call.1} parent=5 // pred_region
        %s338 = ssub.s32 %s24, 1
        %s339 = sand.u32 %s37, 1
        %s340 = scalar_lea.sflag [#allocation3], %s339
        %s341 = sand.u32 %s37, 1
        %s342 = smul.addr %s341, 8
        %s343 = scalar_lea.vmem [#allocation2], %s342
        // Predicated region
        $region53: #{tpu_custom_call.1} parent=51 // pred_check
          %p344 = pneg %p50
        $region54: #{tpu_custom_call.1} parent=51 // pred_check_branch
          %346 = sbr.rel (%p344) target = $region56
        $region55: #{tpu_custom_call.1} parent=51 // pred_region
          %348 = dma.done %s340, 128
        $region56: #{tpu_custom_call.1} parent=51 // pred_fallthru
          _
        %s349 = sand.u32 %s29, 1
        %s350 = scalar_lea.sflag [#allocation6], %s349
        %s351 = sand.u32 %s63, 1
        %s352 = smul.addr %s351, 16
        %s353 = scalar_lea.vmem [#allocation5], %s352
        // Predicated region
        $region57: #{tpu_custom_call.1} parent=51 // pred_check
          %p354 = pneg %p76
        $region58: #{tpu_custom_call.1} parent=51 // pred_check_branch
          %356 = sbr.rel (%p354) target = $region60
        $region59: #{tpu_custom_call.1} parent=51 // pred_region
          %358 = dma.done %s350, 256
        $region60: #{tpu_custom_call.1} parent=51 // pred_fallthru
          _
        // Predicated region
        $region61: #{tpu_custom_call.1} parent=51 // pred_check
          %p359 = pneg %p97
        $region62: #{tpu_custom_call.1} parent=51 // pred_check_branch
          %361 = sbr.rel (%p359) target = $region64
        $region63: #{tpu_custom_call.1} parent=51 // pred_region
          %363 = dma.done [#allocation6], 1024
        $region64: #{tpu_custom_call.1} parent=51 // pred_fallthru
          _
        // Predicated region
        $region65: #{tpu_custom_call.1} parent=51 // pred_check
          %p364 = pneg %p118
        $region66: #{tpu_custom_call.1} parent=51 // pred_check_branch
          %366 = sbr.rel (%p364) target = $region68
        $region67: #{tpu_custom_call.1} parent=51 // pred_region
          %368 = dma.done [#allocation9], 1024
        $region68: #{tpu_custom_call.1} parent=51 // pred_fallthru
          _
        %s369 = sand.u32 %s37, 1
        %s370 = scalar_lea.sflag [#allocation3], %s369
        %s371 = sand.u32 %s37, 1
        %s372 = smul.addr %s371, 8
        %s373 = scalar_lea.vmem [#allocation2], %s372
        %p374 = pneg %p50
        %p375 = pneg %p47
        %s376 = sand.u32 %s29, 1
        %s377 = scalar_lea.sflag [#allocation6], %s376
        %s378 = sand.u32 %s63, 1
        %s379 = smul.addr %s378, 16
        %s380 = scalar_lea.vmem [#allocation5], %s379
        %p381 = pneg %p76
        %p382 = pneg %p73
        %p383 = pneg %p97
        %p384 = pneg %p94
        %p385 = pneg %p118
        %p386 = pneg %p115
        %p387 = pneg %p139
        %p388 = pneg %p136
        %p389 = pneg %p160
        %p390 = pneg %p157
        %p391 = pneg %p181
        %p392 = pneg %p178
        %p393 = pneg %p202
        %p394 = pneg %p199
        %p395 = pneg %p228
        %p396 = pneg %p225
        %s397 = sand.u32 %s215, 1
        %s398 = scalar_lea.sflag [#allocation4], %s397
        %s399 = sand.u32 %s215, 1
        %s400 = smul.addr %s399, 16
        %s401 = scalar_lea.vmem [#allocation10], %s400
        %s402 = smul.u32 2, %s29
        %s403 = smul.u32 2, %s29
        %s404 = smul.u32 2, %s29
        %v406 = vld [vmem:[#allocation8] sm:$0xff]
        %v407 = vld [vmem:[#allocation8 + $0x8] sm:$0xff]
        %v408 = vld [vmem:[#allocation8 + $0x10] sm:$0xff]
        %v409 = vld [vmem:[#allocation8 + $0x18] sm:$0xff]
        %v410 = vld [vmem:[#allocation8 + $0x20] sm:$0x1]
        %v411 = vld [vmem:[#allocation8 + $0x28] sm:$0x1]
        %v412 = vld [vmem:[#allocation8 + $0x30] sm:$0x1]
        %v413 = vld [vmem:[#allocation8 + $0x38] sm:$0x1]
        %v414 = vld [vmem:[#allocation7] sm:$0xff]
        %v415 = vld [vmem:[#allocation7 + $0x8] sm:$0xff]
        %v416 = vld [vmem:[#allocation7 + $0x10] sm:$0xff]
        %v417 = vld [vmem:[#allocation7 + $0x18] sm:$0xff]
        %v418 = vld [vmem:[#allocation7 + $0x20] sm:$0xff]
        %v419 = vld [vmem:[#allocation7 + $0x28] sm:$0xff]
        %v420 = vld [vmem:[#allocation7 + $0x30] sm:$0xff]
        %v421 = vld [vmem:[#allocation7 + $0x38] sm:$0xff]
        %v422 = vld [vmem:[%s343] sm:$0xf]
        %v423 = vpack.c.bf16 %v422, %v422
        %v432 = vunpack.c.l.b16 %v414
        %v433 = vunpack.c.h.b16 %v414
        %v434 = vunpack.c.l.b16 %v415
        %v435 = vunpack.c.h.b16 %v415
        %v436 = vunpack.c.l.b16 %v416
        %v437 = vunpack.c.h.b16 %v416
        %v438 = vunpack.c.l.b16 %v417
        %v439 = vunpack.c.h.b16 %v417
        %v440 = vunpack.c.l.b16 %v418
        %v441 = vunpack.c.h.b16 %v418
        %v442 = vunpack.c.l.b16 %v419
        %v443 = vunpack.c.h.b16 %v419
        %v444 = vunpack.c.l.b16 %v420
        %v445 = vunpack.c.h.b16 %v420
        %v446 = vunpack.c.l.b16 %v421
        %v447 = vunpack.c.h.b16 %v421
        %v448 = vpack.c.b16 %v434, %v432
        %v449 = vpack.c.b16 %v435, %v433
        %v450 = vpack.c.b16 %v438, %v436
        %v451 = vpack.c.b16 %v439, %v437
        %v452 = vpack.c.b16 %v442, %v440
        %v453 = vpack.c.b16 %v443, %v441
        %v454 = vpack.c.b16 %v446, %v444
        %v455 = vpack.c.b16 %v447, %v445
        %vm464 = vcmask 523264
        %v466 = vsel %vm464, %v423, 0
        %468 = vmatpush.bf16.msra.mxu0 0
        %469 = vmatpush.bf16.msra.mxu0 0
        %470 = vmatpush.bf16.msra.mxu0 0
        %471 = vmatpush.bf16.msra.mxu0 0
        %472 = vmatpush.bf16.msra.mxu0 %v454
        %473 = vmatpush.bf16.msra.mxu0 %v452
        %474 = vmatpush.bf16.msra.mxu0 %v450
        %475 = vmatpush.bf16.msra.mxu0 %v448
        %476 = vmatmul.bf16.gmra.mxu0 %v466
        %v477 = vpop.f32.mrf.mxu0
        %v478 = vadd.f32 0.0, %v477
        %v479 = vpop.f32.mrf.mxu0
        %480 = vdwg.mxu0
        %481 = vmatpush.bf16.msra.mxu0 0
        %482 = vmatpush.bf16.msra.mxu0 0
        %483 = vmatpush.bf16.msra.mxu0 0
        %484 = vmatpush.bf16.msra.mxu0 0
        %485 = vmatpush.bf16.msra.mxu0 %v455
        %486 = vmatpush.bf16.msra.mxu0 %v453
        %487 = vmatpush.bf16.msra.mxu0 %v451
        %488 = vmatpush.bf16.msra.mxu0 %v449
        %489 = vmatmul.bf16.gmra.mxu0 %v466
        %v490 = vpop.f32.mrf.mxu0
        %v491 = vadd.f32 0.0, %v490
        %v492 = vpop.f32.mrf.mxu0
        %493 = vdwg.mxu0
        %v494 = vld [vmem:[%s353] sm:$0xff]
        %s496 = scalar_lea.vmem [#allocation1], 1
        %497 = vst [vmem:[%s496] ss:$2 sm:$0xff] %v494
        %v498 = vld.sshfl [vmem:[#allocation1] sm:$0xff pattern:$0x75316420]
        %v499 = vld.sshfl [vmem:[#allocation1 + $0x8] sm:$0xff pattern:$0x75316420]
        %vm502 = vcmask 1043456
        %v503 = vsel %vm502, %v478, %v498
        %v504 = vsel %vm502, %v491, %v499
        %s505 = scalar_lea.vmem %s343, 4 [#allocation2]
        %v506 = vld [vmem:[%s505] sm:$0xf]
        %v507 = vpack.c.bf16 %v506, %v506
        %v509 = vsel %vm464, %v507, 0
        %511 = vmatpush.bf16.msra.mxu0 0
        %512 = vmatpush.bf16.msra.mxu0 0
        %513 = vmatpush.bf16.msra.mxu0 0
        %514 = vmatpush.bf16.msra.mxu0 0
        %515 = vmatpush.bf16.msra.mxu0 %v454
        %516 = vmatpush.bf16.msra.mxu0 %v452
        %517 = vmatpush.bf16.msra.mxu0 %v450
        %518 = vmatpush.bf16.msra.mxu0 %v448
        %519 = vmatmul.bf16.gmra.mxu0 %v509
        %v520 = vpop.f32.mrf.mxu0
        %v521 = vadd.f32 0.0, %v520
        %v522 = vpop.f32.mrf.mxu0
        %523 = vdwg.mxu0
        %524 = vmatpush.bf16.msra.mxu0 0
        %525 = vmatpush.bf16.msra.mxu0 0
        %526 = vmatpush.bf16.msra.mxu0 0
        %527 = vmatpush.bf16.msra.mxu0 0
        %528 = vmatpush.bf16.msra.mxu0 %v455
        %529 = vmatpush.bf16.msra.mxu0 %v453
        %530 = vmatpush.bf16.msra.mxu0 %v451
        %531 = vmatpush.bf16.msra.mxu0 %v449
        %532 = vmatmul.bf16.gmra.mxu0 %v509
        %v533 = vpop.f32.mrf.mxu0
        %v534 = vadd.f32 0.0, %v533
        %v535 = vpop.f32.mrf.mxu0
        %536 = vdwg.mxu0
        %s537 = scalar_lea.vmem %s353, 8 [#allocation5]
        %v538 = vld [vmem:[%s537] sm:$0xff]
        %s540 = scalar_lea.vmem [#allocation1], 1
        %541 = vst [vmem:[%s540] ss:$2 sm:$0xff] %v538
        %v542 = vld.sshfl [vmem:[#allocation1] sm:$0xff pattern:$0x75316420]
        %v543 = vld.sshfl [vmem:[#allocation1 + $0x8] sm:$0xff pattern:$0x75316420]
        %v546 = vsel %vm502, %v521, %v542
        %v547 = vsel %vm502, %v534, %v543
        %v548 = vld [vmem:[%s4] sm:$0xf]
        %v549 = vld [vmem:[%s5] sm:$0xff]
        %550 = vrot.lane.b32.xlu0 %v503, 17
        %v551 = vpop.permute.xlu0 %550
        %552 = vrot.lane.b32.xlu0 %v504, 17
        %v553 = vpop.permute.xlu0 %552
        %554 = vrot.lane.b32.xlu0 %v546, 17
        %v555 = vpop.permute.xlu0 %554
        %556 = vrot.lane.b32.xlu0 %v547, 17
        %v557 = vpop.permute.xlu0 %556
        %v558 = vlaneseq
        %v559 = vand.u32 %v558, 127
        %vm560 = vcmp.lt.s32.totalorder %v559, 17
        %v561 = vsel %vm560, %v555, %v557
        %v562 = vsel %vm560, %v553, %v555
        %v563 = vsel %vm560, %v551, %v553
        %v564 = vsel %vm560, %v557, %v551
        %v565 = vperm.slane %v406, 0
        %v566 = vperm.slane %v407, 0
        %v567 = vperm.slane %v408, 0
        %v568 = vperm.slane %v409, 0
        %v569 = vmul.f32 %v564, %v565
        %v570 = vmul.f32 %v563, %v566
        %v571 = vmul.f32 %v562, %v567
        %v572 = vmul.f32 %v561, %v568
        %573 = vrot.lane.b32.xlu0 %v503, 16
        %v574 = vpop.permute.xlu0 %573
        %575 = vrot.lane.b32.xlu0 %v504, 16
        %v576 = vpop.permute.xlu0 %575
        %577 = vrot.lane.b32.xlu0 %v546, 16
        %v578 = vpop.permute.xlu0 %577
        %579 = vrot.lane.b32.xlu0 %v547, 16
        %v580 = vpop.permute.xlu0 %579
        %vm581 = vcmp.lt.s32.totalorder %v559, 16
        %v582 = vsel %vm581, %v578, %v580
        %v583 = vsel %vm581, %v576, %v578
        %v584 = vsel %vm581, %v574, %v576
        %v585 = vsel %vm581, %v580, %v574
        %v586 = vperm.slane %v406, 1
        %v587 = vperm.slane %v407, 1
        %v588 = vperm.slane %v408, 1
        %v589 = vperm.slane %v409, 1
        %v590 = vmul.f32 %v585, %v586
        %v591 = vmul.f32 %v584, %v587
        %v592 = vmul.f32 %v583, %v588
        %v593 = vmul.f32 %v582, %v589
        %594 = vrot.lane.b32.xlu0 %v503, 15
        %v595 = vpop.permute.xlu0 %594
        %596 = vrot.lane.b32.xlu0 %v504, 15
        %v597 = vpop.permute.xlu0 %596
        %598 = vrot.lane.b32.xlu0 %v546, 15
        %v599 = vpop.permute.xlu0 %598
        %600 = vrot.lane.b32.xlu0 %v547, 15
        %v601 = vpop.permute.xlu0 %600
        %vm602 = vcmp.lt.s32.totalorder %v559, 15
        %v603 = vsel %vm602, %v599, %v601
        %v604 = vsel %vm602, %v597, %v599
        %v605 = vsel %vm602, %v595, %v597
        %v606 = vsel %vm602, %v601, %v595
        %v607 = vperm.slane %v406, 2
        %v608 = vperm.slane %v407, 2
        %v609 = vperm.slane %v408, 2
        %v610 = vperm.slane %v409, 2
        %v611 = vmul.f32 %v606, %v607
        %v612 = vmul.f32 %v605, %v608
        %v613 = vmul.f32 %v604, %v609
        %v614 = vmul.f32 %v603, %v610
        %615 = vrot.lane.b32.xlu0 %v503, 1
        %v616 = vpop.permute.xlu0 %615
        %617 = vrot.lane.b32.xlu0 %v504, 1
        %v618 = vpop.permute.xlu0 %617
        %619 = vrot.lane.b32.xlu0 %v546, 1
        %v620 = vpop.permute.xlu0 %619
        %621 = vrot.lane.b32.xlu0 %v547, 1
        %v622 = vpop.permute.xlu0 %621
        %vm623 = vcmp.lt.s32.totalorder %v559, 1
        %v624 = vsel %vm623, %v620, %v622
        %v625 = vsel %vm623, %v618, %v620
        %v626 = vsel %vm623, %v616, %v618
        %v627 = vsel %vm623, %v622, %v616
        %v628 = vperm.slane %v406, 3
        %v629 = vperm.slane %v407, 3
        %v630 = vperm.slane %v408, 3
        %v631 = vperm.slane %v409, 3
        %v632 = vmul.f32 %v627, %v628
        %v633 = vmul.f32 %v626, %v629
        %v634 = vmul.f32 %v625, %v630
        %v635 = vmul.f32 %v624, %v631
        %636 = vrot.lane.b32.xlu0 %v503, 127
        %v637 = vpop.permute.xlu0 %636
        %638 = vrot.lane.b32.xlu0 %v504, 127
        %v639 = vpop.permute.xlu0 %638
        %640 = vrot.lane.b32.xlu0 %v546, 127
        %v641 = vpop.permute.xlu0 %640
        %642 = vrot.lane.b32.xlu0 %v547, 127
        %v643 = vpop.permute.xlu0 %642
        %vm644 = vcmp.lt.s32.totalorder %v559, 127
        %v645 = vsel %vm644, %v641, %v643
        %v646 = vsel %vm644, %v639, %v641
        %v647 = vsel %vm644, %v637, %v639
        %v648 = vsel %vm644, %v643, %v637
        %v649 = vperm.slane %v406, 5
        %v650 = vperm.slane %v407, 5
        %v651 = vperm.slane %v408, 5
        %v652 = vperm.slane %v409, 5
        %v653 = vmul.f32 %v647, %v649
        %v654 = vmul.f32 %v646, %v650
        %v655 = vmul.f32 %v645, %v651
        %v656 = vmul.f32 %v648, %v652
        %657 = vrot.lane.b32.xlu0 %v503, 113
        %v658 = vpop.permute.xlu0 %657
        %659 = vrot.lane.b32.xlu0 %v504, 113
        %v660 = vpop.permute.xlu0 %659
        %661 = vrot.lane.b32.xlu0 %v546, 113
        %v662 = vpop.permute.xlu0 %661
        %663 = vrot.lane.b32.xlu0 %v547, 113
        %v664 = vpop.permute.xlu0 %663
        %vm665 = vcmp.lt.s32.totalorder %v559, 113
        %v666 = vsel %vm665, %v662, %v664
        %v667 = vsel %vm665, %v660, %v662
        %v668 = vsel %vm665, %v658, %v660
        %v669 = vsel %vm665, %v664, %v658
        %v670 = vperm.slane %v406, 6
        %v671 = vperm.slane %v407, 6
        %v672 = vperm.slane %v408, 6
        %v673 = vperm.slane %v409, 6
        %v674 = vmul.f32 %v668, %v670
        %v675 = vmul.f32 %v667, %v671
        %v676 = vmul.f32 %v666, %v672
        %v677 = vmul.f32 %v669, %v673
        %678 = vrot.lane.b32.xlu0 %v503, 112
        %v679 = vpop.permute.xlu0 %678
        %680 = vrot.lane.b32.xlu0 %v504, 112
        %v681 = vpop.permute.xlu0 %680
        %682 = vrot.lane.b32.xlu0 %v546, 112
        %v683 = vpop.permute.xlu0 %682
        %684 = vrot.lane.b32.xlu0 %v547, 112
        %v685 = vpop.permute.xlu0 %684
        %vm686 = vcmp.lt.s32.totalorder %v559, 112
        %v687 = vsel %vm686, %v683, %v685
        %v688 = vsel %vm686, %v681, %v683
        %v689 = vsel %vm686, %v679, %v681
        %v690 = vsel %vm686, %v685, %v679
        %v691 = vperm.slane %v406, 7
        %v692 = vperm.slane %v407, 7
        %v693 = vperm.slane %v408, 7
        %v694 = vperm.slane %v409, 7
        %v695 = vmul.f32 %v689, %v691
        %v696 = vmul.f32 %v688, %v692
        %v697 = vmul.f32 %v687, %v693
        %v698 = vmul.f32 %v690, %v694
        %699 = vrot.lane.b32.xlu0 %v503, 111
        %v700 = vpop.permute.xlu0 %699
        %701 = vrot.lane.b32.xlu0 %v504, 111
        %v702 = vpop.permute.xlu0 %701
        %703 = vrot.lane.b32.xlu0 %v546, 111
        %v704 = vpop.permute.xlu0 %703
        %705 = vrot.lane.b32.xlu0 %v547, 111
        %v706 = vpop.permute.xlu0 %705
        %vm707 = vcmp.lt.s32.totalorder %v559, 111
        %v708 = vsel %vm707, %v704, %v706
        %v709 = vsel %vm707, %v702, %v704
        %v710 = vsel %vm707, %v700, %v702
        %v711 = vsel %vm707, %v706, %v700
        %v712 = vperm.slane %v410, 0
        %v713 = vperm.slane %v411, 0
        %v714 = vperm.slane %v412, 0
        %v715 = vperm.slane %v413, 0
        %v716 = vmul.f32 %v710, %v712
        %v717 = vmul.f32 %v709, %v713
        %v718 = vmul.f32 %v708, %v714
        %v719 = vmul.f32 %v711, %v715
        %v720 = vpack.c.bf16 %v590, %v569
        %v721 = vpack.c.bf16 %v591, %v570
        %v722 = vpack.c.bf16 %v592, %v571
        %v723 = vpack.c.bf16 %v593, %v572
        %v724 = vpack.c.bf16 %v632, %v611
        %v725 = vpack.c.bf16 %v633, %v612
        %v726 = vpack.c.bf16 %v634, %v613
        %v727 = vpack.c.bf16 %v635, %v614
        %v728 = vpack.c.bf16 %v653, %v503
        %v729 = vpack.c.bf16 %v654, %v504
        %v730 = vpack.c.bf16 %v655, %v546
        %v731 = vpack.c.bf16 %v656, %v547
        %v732 = vpack.c.bf16 %v695, %v674
        %v733 = vpack.c.bf16 %v696, %v675
        %v734 = vpack.c.bf16 %v697, %v676
        %v735 = vpack.c.bf16 %v698, %v677
        %v736 = vpack.c.bf16 %v716, %v716
        %v737 = vpack.c.bf16 %v717, %v717
        %v738 = vpack.c.bf16 %v718, %v718
        %v739 = vpack.c.bf16 %v719, %v719
        %741 = vset.pattern.permute.xlu0 0
        %742 = vperm.xlu0 %741, %v549
        %v743 = vpop.permute.xlu0 %742
        %vm745 = vcmask 588800
        %v747 = vsel %vm745, %v548, 0
        %v750 = vsel %vm502, %v736, 0
        %v753 = vsel %vm502, %v737, 0
        %v756 = vsel %vm502, %v738, 0
        %v759 = vsel %vm502, %v739, 0
        %761 = vmatpush.bf16.msra.mxu0 0
        %762 = vmatpush.bf16.msra.mxu0 0
        %763 = vmatpush.bf16.msra.mxu0 0
        %764 = vmatpush.bf16.msra.mxu0 %v750
        %765 = vmatpush.bf16.msra.mxu0 %v732
        %766 = vmatpush.bf16.msra.mxu0 %v728
        %767 = vmatpush.bf16.msra.mxu0 %v724
        %768 = vmatpush.bf16.msra.mxu0 %v720
        %769 = vmatmul.bf16.gmra.mxu0 %v747
        %v770 = vpop.f32.mrf.mxu0
        %v771 = vadd.f32 %v743, %v770
        %v772 = vpop.f32.mrf.mxu0
        %773 = vdwg.mxu0
        %774 = vmatpush.bf16.msra.mxu0 0
        %775 = vmatpush.bf16.msra.mxu0 0
        %776 = vmatpush.bf16.msra.mxu0 0
        %777 = vmatpush.bf16.msra.mxu0 %v753
        %778 = vmatpush.bf16.msra.mxu0 %v733
        %779 = vmatpush.bf16.msra.mxu0 %v729
        %780 = vmatpush.bf16.msra.mxu0 %v725
        %781 = vmatpush.bf16.msra.mxu0 %v721
        %782 = vmatmul.bf16.gmra.mxu0 %v747
        %v783 = vpop.f32.mrf.mxu0
        %v784 = vadd.f32 %v743, %v783
        %v785 = vpop.f32.mrf.mxu0
        %786 = vdwg.mxu0
        %787 = vmatpush.bf16.msra.mxu0 0
        %788 = vmatpush.bf16.msra.mxu0 0
        %789 = vmatpush.bf16.msra.mxu0 0
        %790 = vmatpush.bf16.msra.mxu0 %v756
        %791 = vmatpush.bf16.msra.mxu0 %v734
        %792 = vmatpush.bf16.msra.mxu0 %v730
        %793 = vmatpush.bf16.msra.mxu0 %v726
        %794 = vmatpush.bf16.msra.mxu0 %v722
        %795 = vmatmul.bf16.gmra.mxu0 %v747
        %v796 = vpop.f32.mrf.mxu0
        %v797 = vadd.f32 %v743, %v796
        %v798 = vpop.f32.mrf.mxu0
        %799 = vdwg.mxu0
        %800 = vmatpush.bf16.msra.mxu0 0
        %801 = vmatpush.bf16.msra.mxu0 0
        %802 = vmatpush.bf16.msra.mxu0 0
        %803 = vmatpush.bf16.msra.mxu0 %v759
        %804 = vmatpush.bf16.msra.mxu0 %v735
        %805 = vmatpush.bf16.msra.mxu0 %v731
        %806 = vmatpush.bf16.msra.mxu0 %v727
        %807 = vmatpush.bf16.msra.mxu0 %v723
        %808 = vmatmul.bf16.gmra.mxu0 %v747
        %v809 = vpop.f32.mrf.mxu0
        %v810 = vadd.f32 %v743, %v809
        %v811 = vpop.f32.mrf.mxu0
        %812 = vdwg.mxu0
        %vm813 = vcmp.ge.f32.partialorder %v771, 0.0
        %vm814 = vcmp.ge.f32.partialorder %v784, 0.0
        %vm815 = vcmp.ge.f32.partialorder %v797, 0.0
        %vm816 = vcmp.ge.f32.partialorder %v810, 0.0
        %v817 = vmul.f32 %v771, 0.2
        %v818 = vmul.f32 %v784, 0.2
        %v819 = vmul.f32 %v797, 0.2
        %v820 = vmul.f32 %v810, 0.2
        %v821 = vsel %vm813, %v771, %v817
        %v822 = vsel %vm814, %v784, %v818
        %v823 = vsel %vm815, %v797, %v819
        %v824 = vsel %vm816, %v810, %v820
        %v825 = vld [vmem:[%s6] sm:$0x3]
        %v826 = vld [vmem:[%s7] sm:$0xf]
        %827 = vrot.lane.b32.xlu0 %v821, 17
        %v828 = vpop.permute.xlu0 %827
        %829 = vrot.lane.b32.xlu0 %v822, 17
        %v830 = vpop.permute.xlu0 %829
        %831 = vrot.lane.b32.xlu0 %v823, 17
        %v832 = vpop.permute.xlu0 %831
        %833 = vrot.lane.b32.xlu0 %v824, 17
        %v834 = vpop.permute.xlu0 %833
        %v835 = vsel %vm560, %v832, %v834
        %v836 = vsel %vm560, %v830, %v832
        %v837 = vsel %vm560, %v828, %v830
        %v838 = vsel %vm560, %v834, %v828
        %v839 = vmul.f32 %v838, %v565
        %v840 = vmul.f32 %v837, %v566
        %v841 = vmul.f32 %v836, %v567
        %v842 = vmul.f32 %v835, %v568
        %843 = vrot.lane.b32.xlu0 %v821, 16
        %v844 = vpop.permute.xlu0 %843
        %845 = vrot.lane.b32.xlu0 %v822, 16
        %v846 = vpop.permute.xlu0 %845
        %847 = vrot.lane.b32.xlu0 %v823, 16
        %v848 = vpop.permute.xlu0 %847
        %849 = vrot.lane.b32.xlu0 %v824, 16
        %v850 = vpop.permute.xlu0 %849
        %v851 = vsel %vm581, %v848, %v850
        %v852 = vsel %vm581, %v846, %v848
        %v853 = vsel %vm581, %v844, %v846
        %v854 = vsel %vm581, %v850, %v844
        %v855 = vmul.f32 %v854, %v586
        %v856 = vmul.f32 %v853, %v587
        %v857 = vmul.f32 %v852, %v588
        %v858 = vmul.f32 %v851, %v589
        %859 = vrot.lane.b32.xlu0 %v821, 15
        %v860 = vpop.permute.xlu0 %859
        %861 = vrot.lane.b32.xlu0 %v822, 15
        %v862 = vpop.permute.xlu0 %861
        %863 = vrot.lane.b32.xlu0 %v823, 15
        %v864 = vpop.permute.xlu0 %863
        %865 = vrot.lane.b32.xlu0 %v824, 15
        %v866 = vpop.permute.xlu0 %865
        %v867 = vsel %vm602, %v864, %v866
        %v868 = vsel %vm602, %v862, %v864
        %v869 = vsel %vm602, %v860, %v862
        %v870 = vsel %vm602, %v866, %v860
        %v871 = vmul.f32 %v870, %v607
        %v872 = vmul.f32 %v869, %v608
        %v873 = vmul.f32 %v868, %v609
        %v874 = vmul.f32 %v867, %v610
        %875 = vrot.lane.b32.xlu0 %v821, 1
        %v876 = vpop.permute.xlu0 %875
        %877 = vrot.lane.b32.xlu0 %v822, 1
        %v878 = vpop.permute.xlu0 %877
        %879 = vrot.lane.b32.xlu0 %v823, 1
        %v880 = vpop.permute.xlu0 %879
        %881 = vrot.lane.b32.xlu0 %v824, 1
        %v882 = vpop.permute.xlu0 %881
        %v883 = vsel %vm623, %v880, %v882
        %v884 = vsel %vm623, %v878, %v880
        %v885 = vsel %vm623, %v876, %v878
        %v886 = vsel %vm623, %v882, %v876
        %v887 = vmul.f32 %v886, %v628
        %v888 = vmul.f32 %v885, %v629
        %v889 = vmul.f32 %v884, %v630
        %v890 = vmul.f32 %v883, %v631
        %891 = vrot.lane.b32.xlu0 %v821, 127
        %v892 = vpop.permute.xlu0 %891
        %893 = vrot.lane.b32.xlu0 %v822, 127
        %v894 = vpop.permute.xlu0 %893
        %895 = vrot.lane.b32.xlu0 %v823, 127
        %v896 = vpop.permute.xlu0 %895
        %897 = vrot.lane.b32.xlu0 %v824, 127
        %v898 = vpop.permute.xlu0 %897
        %v899 = vsel %vm644, %v896, %v898
        %v900 = vsel %vm644, %v894, %v896
        %v901 = vsel %vm644, %v892, %v894
        %v902 = vsel %vm644, %v898, %v892
        %v903 = vmul.f32 %v901, %v649
        %v904 = vmul.f32 %v900, %v650
        %v905 = vmul.f32 %v899, %v651
        %v906 = vmul.f32 %v902, %v652
        %907 = vrot.lane.b32.xlu0 %v821, 113
        %v908 = vpop.permute.xlu0 %907
        %909 = vrot.lane.b32.xlu0 %v822, 113
        %v910 = vpop.permute.xlu0 %909
        %911 = vrot.lane.b32.xlu0 %v823, 113
        %v912 = vpop.permute.xlu0 %911
        %913 = vrot.lane.b32.xlu0 %v824, 113
        %v914 = vpop.permute.xlu0 %913
        %v915 = vsel %vm665, %v912, %v914
        %v916 = vsel %vm665, %v910, %v912
        %v917 = vsel %vm665, %v908, %v910
        %v918 = vsel %vm665, %v914, %v908
        %v919 = vmul.f32 %v917, %v670
        %v920 = vmul.f32 %v916, %v671
        %v921 = vmul.f32 %v915, %v672
        %v922 = vmul.f32 %v918, %v673
        %923 = vrot.lane.b32.xlu0 %v821, 112
        %v924 = vpop.permute.xlu0 %923
        %925 = vrot.lane.b32.xlu0 %v822, 112
        %v926 = vpop.permute.xlu0 %925
        %927 = vrot.lane.b32.xlu0 %v823, 112
        %v928 = vpop.permute.xlu0 %927
        %929 = vrot.lane.b32.xlu0 %v824, 112
        %v930 = vpop.permute.xlu0 %929
        %v931 = vsel %vm686, %v928, %v930
        %v932 = vsel %vm686, %v926, %v928
        %v933 = vsel %vm686, %v924, %v926
        %v934 = vsel %vm686, %v930, %v924
        %v935 = vmul.f32 %v933, %v691
        %v936 = vmul.f32 %v932, %v692
        %v937 = vmul.f32 %v931, %v693
        %v938 = vmul.f32 %v934, %v694
        %939 = vrot.lane.b32.xlu0 %v821, 111
        %v940 = vpop.permute.xlu0 %939
        %941 = vrot.lane.b32.xlu0 %v822, 111
        %v942 = vpop.permute.xlu0 %941
        %943 = vrot.lane.b32.xlu0 %v823, 111
        %v944 = vpop.permute.xlu0 %943
        %945 = vrot.lane.b32.xlu0 %v824, 111
        %v946 = vpop.permute.xlu0 %945
        %v947 = vsel %vm707, %v944, %v946
        %v948 = vsel %vm707, %v942, %v944
        %v949 = vsel %vm707, %v940, %v942
        %v950 = vsel %vm707, %v946, %v940
        %v951 = vmul.f32 %v949, %v712
        %v952 = vmul.f32 %v948, %v713
        %v953 = vmul.f32 %v947, %v714
        %v954 = vmul.f32 %v950, %v715
        %v955 = vpack.c.bf16 %v855, %v839
        %v956 = vpack.c.bf16 %v856, %v840
        %v957 = vpack.c.bf16 %v857, %v841
        %v958 = vpack.c.bf16 %v858, %v842
        %v959 = vpack.c.bf16 %v887, %v871
        %v960 = vpack.c.bf16 %v888, %v872
        %v961 = vpack.c.bf16 %v889, %v873
        %v962 = vpack.c.bf16 %v890, %v874
        %v963 = vpack.c.bf16 %v903, %v821
        %v964 = vpack.c.bf16 %v904, %v822
        %v965 = vpack.c.bf16 %v905, %v823
        %v966 = vpack.c.bf16 %v906, %v824
        %v967 = vpack.c.bf16 %v935, %v919
        %v968 = vpack.c.bf16 %v936, %v920
        %v969 = vpack.c.bf16 %v937, %v921
        %v970 = vpack.c.bf16 %v938, %v922
        %v971 = vpack.c.bf16 %v951, %v951
        %v972 = vpack.c.bf16 %v952, %v952
        %v973 = vpack.c.bf16 %v953, %v953
        %v974 = vpack.c.bf16 %v954, %v954
        %976 = vset.pattern.permute.xlu0 0
        %977 = vperm.xlu0 %976, %v826
        %v978 = vpop.permute.xlu0 %977
        %v981 = vsel %vm745, %v825, 0
        %v984 = vsel %vm502, %v971, 0
        %v987 = vsel %vm502, %v972, 0
        %v990 = vsel %vm502, %v973, 0
        %v993 = vsel %vm502, %v974, 0
        %995 = vmatpush.bf16.msra.mxu0 0
        %996 = vmatpush.bf16.msra.mxu0 0
        %997 = vmatpush.bf16.msra.mxu0 0
        %998 = vmatpush.bf16.msra.mxu0 %v984
        %999 = vmatpush.bf16.msra.mxu0 %v967
        %1000 = vmatpush.bf16.msra.mxu0 %v963
        %1001 = vmatpush.bf16.msra.mxu0 %v959
        %1002 = vmatpush.bf16.msra.mxu0 %v955
        %1003 = vmatmul.bf16.gmra.mxu0 %v981
        %v1004 = vpop.f32.mrf.mxu0
        %v1005 = vadd.f32 %v978, %v1004
        %v1006 = vpop.f32.mrf.mxu0
        %1007 = vdwg.mxu0
        %1008 = vmatpush.bf16.msra.mxu0 0
        %1009 = vmatpush.bf16.msra.mxu0 0
        %1010 = vmatpush.bf16.msra.mxu0 0
        %1011 = vmatpush.bf16.msra.mxu0 %v987
        %1012 = vmatpush.bf16.msra.mxu0 %v968
        %1013 = vmatpush.bf16.msra.mxu0 %v964
        %1014 = vmatpush.bf16.msra.mxu0 %v960
        %1015 = vmatpush.bf16.msra.mxu0 %v956
        %1016 = vmatmul.bf16.gmra.mxu0 %v981
        %v1017 = vpop.f32.mrf.mxu0
        %v1018 = vadd.f32 %v978, %v1017
        %v1019 = vpop.f32.mrf.mxu0
        %1020 = vdwg.mxu0
        %1021 = vmatpush.bf16.msra.mxu0 0
        %1022 = vmatpush.bf16.msra.mxu0 0
        %1023 = vmatpush.bf16.msra.mxu0 0
        %1024 = vmatpush.bf16.msra.mxu0 %v990
        %1025 = vmatpush.bf16.msra.mxu0 %v969
        %1026 = vmatpush.bf16.msra.mxu0 %v965
        %1027 = vmatpush.bf16.msra.mxu0 %v961
        %1028 = vmatpush.bf16.msra.mxu0 %v957
        %1029 = vmatmul.bf16.gmra.mxu0 %v981
        %v1030 = vpop.f32.mrf.mxu0
        %v1031 = vadd.f32 %v978, %v1030
        %v1032 = vpop.f32.mrf.mxu0
        %1033 = vdwg.mxu0
        %1034 = vmatpush.bf16.msra.mxu0 0
        %1035 = vmatpush.bf16.msra.mxu0 0
        %1036 = vmatpush.bf16.msra.mxu0 0
        %1037 = vmatpush.bf16.msra.mxu0 %v993
        %1038 = vmatpush.bf16.msra.mxu0 %v970
        %1039 = vmatpush.bf16.msra.mxu0 %v966
        %1040 = vmatpush.bf16.msra.mxu0 %v962
        %1041 = vmatpush.bf16.msra.mxu0 %v958
        %1042 = vmatmul.bf16.gmra.mxu0 %v981
        %v1043 = vpop.f32.mrf.mxu0
        %v1044 = vadd.f32 %v978, %v1043
        %v1045 = vpop.f32.mrf.mxu0
        %1046 = vdwg.mxu0
        %vm1047 = vcmp.ge.f32.partialorder %v1005, 0.0
        %vm1048 = vcmp.ge.f32.partialorder %v1018, 0.0
        %vm1049 = vcmp.ge.f32.partialorder %v1031, 0.0
        %vm1050 = vcmp.ge.f32.partialorder %v1044, 0.0
        %v1051 = vmul.f32 %v1005, 0.2
        %v1052 = vmul.f32 %v1018, 0.2
        %v1053 = vmul.f32 %v1031, 0.2
        %v1054 = vmul.f32 %v1044, 0.2
        %v1055 = vsel %vm1047, %v1005, %v1051
        %v1056 = vsel %vm1048, %v1018, %v1052
        %v1057 = vsel %vm1049, %v1031, %v1053
        %v1058 = vsel %vm1050, %v1044, %v1054
        %v1061 = vrot.slane %v1056, 4
        %v1062 = vsel %vm502, %v1055, %v1061
        %1064 = vst [vmem:[%s401] sm:$0xff] %v1062
        %v1067 = vrot.slane %v1058, 4
        %v1068 = vsel %vm502, %v1057, %v1067
        %s1070 = scalar_lea.vmem %s401, 8 [#allocation10]
        %1071 = vst [vmem:[%s1070] sm:$0xff] %v1068
        %s1072 = sand.u32 %s215, 1
        %s1073 = scalar_lea.sflag [#allocation4], %s1072
        %s1074 = sand.u32 %s215, 1
        %s1075 = smul.addr %s1074, 16
        %s1076 = scalar_lea.vmem [#allocation10], %s1075
        // Predicated region
        $region69: #{tpu_custom_call.1} parent=51 // pred_check
          %p1077 = pneg %p225
        $region70: #{tpu_custom_call.1} parent=51 // pred_check_branch
          %1079 = sbr.rel (%p1077) target = $region72
        $region71: #{tpu_custom_call.1} parent=51 // pred_region
          %s1080 = smul.u32 2, %s29
          %1082 = vsyncadd %s1073, 0
          %s1083 = smul.addr %s1080, 2
          %s1084 = smul.addr %s1083, 4
          %s1085 = scalar_lea.hbm %s8, %s1084
          %s1086 = sshll.u32 %s1076, 4
          %s1087 = int_to_ptr.vmem [resolvable:$true] %s1086
          %s1088 = sshll.u32 %s1085, 4
          %s1089 = int_to_ptr.hbm [resolvable:$true] %s1088
          %1094 = dma.vmem_to_hbm [thread:$0]  %s1087, 256, %s1089, %s1073, 128, 128, 8
        $region72: #{tpu_custom_call.1} parent=51 // pred_fallthru
          _
      $region52: #{tpu_custom_call.1} parent=5 // pred_fallthru
        _
      %p1095 = scmp.le.s32.totalorder 2, %s24
      // Predicated region
      $region73: #{tpu_custom_call.1} parent=5 // pred_check
        %p1096 = pneg %p1095
      $region74: #{tpu_custom_call.1} parent=5 // pred_check_branch
        %1098 = sbr.rel (%p1096) target = $region76
      $region75: #{tpu_custom_call.1} parent=5 // pred_region
        %s1099 = ssub.s32 %s24, 2
        // Predicated region
        $region77: #{tpu_custom_call.1} parent=75 // pred_check
          %p1100 = pneg %p231
        $region78: #{tpu_custom_call.1} parent=75 // pred_check_branch
          %1102 = sbr.rel (%p1100) target = $region80
        $region79: #{tpu_custom_call.1} parent=75 // pred_region
          %s1103 = sand.u32 %s216, 1
          %s1104 = scalar_lea.sflag [#allocation4], %s1103
          %s1105 = sand.u32 %s216, 1
          %s1106 = smul.addr %s1105, 16
          %s1107 = scalar_lea.vmem [#allocation10], %s1106
          %1109 = dma.done %s1104, 256
        $region80: #{tpu_custom_call.1} parent=75 // pred_fallthru
          _
      $region76: #{tpu_custom_call.1} parent=5 // pred_fallthru
        _
    $region6: #{tpu_custom_call.1} parent=1 // loop_footer
      %s28 = sadd.s32 1, %s24
    $region7: #{tpu_custom_call.1} parent=1 // loop_footer_branch
      %23 = sbr.rel target = $region3
    $region8: #{tpu_custom_call.1} parent=1 // loop_exit
      _
    %1110 = vsyncpa [#allocation3], 1
    %s1111 = scalar_lea.sflag [#allocation3], 1
    %1112 = vsyncpa %s1111, 1
    %1113 = vsyncpa [#allocation6], 1
    %s1114 = scalar_lea.sflag [#allocation6], 1
    %1115 = vsyncpa %s1114, 1
    %1116 = vsyncpa [#allocation9], 1
    %1117 = vsyncpa [#allocation4], 1
    %s1118 = scalar_lea.sflag [#allocation4], 1
    %1119 = vsyncpa %s1118, 1

</llo_original>
